<compile_context>
chip_gen: v7x
topology: tpu7x:2x2x1
jax: 0.10.0
libtpu: 0.0.40
codegen_flags: <defaults>
</compile_context>

<pallas_src>
import functools

import jax
import jax.numpy as jnp
from jax.experimental import pallas as pl
from jax.experimental.pallas import tpu as pltpu

_NEG_LARGE = -1e30  # finite "minus infinity" bias for padded vocab columns (keep f32!)


def _round_up(x, m):
    return (x + m - 1) // m * m


@functools.lru_cache(maxsize=None)
def _tpu_budget():
    """(scoped-VMEM budget bytes, assume-two-tensorcores) for the current chip.

    v5e/v6e: 128 MiB VMEM, 1 TC.  v7x: 64 MiB VMEM, 2 TCs.  If the query fails we
    fall back to the conservative (v7x-like) numbers, which are correct everywhere
    (just slightly smaller row tiles).
    """
    try:
        cap = int(pltpu.get_tpu_info().vmem_capacity_bytes)
    except Exception:
        cap = 64 << 20
    budget = int(min(max(cap - (8 << 20), 32 << 20), 100 << 20))
    two_tc = cap <= (96 << 20)  # v7x heuristic (64 MiB per TC)
    return budget, two_tc


def _derive_tm(N, d_pad, v_pad, tv, tm_max):
    """Generation-aware row tile: largest tm whose VMEM footprint fits the budget."""
    budget, two_tc = _tpu_budget()
    # Double-buffered bf16 weight tile + f32 bias tile + scratch/compiler headroom.
    fixed = 2 * d_pad * tv * 2 + 2 * 8 * tv * 4 + (4 << 20)
    # Per row of tm: double-buffered bf16 activations + double-buffered f32 resident
    # output block (the dominant term: 8 * v_pad bytes per row).
    per_row = 2 * d_pad * 2 + 2 * v_pad * 4
    tm = (budget - fixed) // per_row if budget > fixed else 16
    tm = min(tm, tm_max, _round_up(max(N, 1), 16))
    if two_tc and N >= 32:
        # Keep >= 2 row tiles so the "parallel" row axis spans both v7x TensorCores.
        tm = min(tm, _round_up(-(-N // 2), 16))
    tm = max((tm // 16) * 16, 16)  # multiple of 16 for bf16 sublane packing
    return tm, budget


def _generator_kernel(x_ref, w_ref, b_ref, o_ref, m_ref, l_ref):
    """Grid = (row_tiles 'parallel', vocab_tiles 'arbitrary').

    x_ref: (tm, d_pad) bf16   w_ref: (d_pad, tv) bf16   b_ref: (1, tv) f32
    o_ref: (tm, v_pad) f32    -- resident across the vocab axis (index_map (i, 0))
    m_ref/l_ref: (tm, 1) f32  -- running max / running sum(exp) for online logsumexp
    """
    tv = w_ref.shape[1]
    j = pl.program_id(1)

    @pl.when(j == 0)
    def _init():
        m_ref[...] = jnp.full(m_ref.shape, -jnp.inf, m_ref.dtype)
        l_ref[...] = jnp.zeros(l_ref.shape, l_ref.dtype)

    # MXU: bf16 x bf16 -> f32 accumulation. Bias is already f32 (no per-step cast).
    logits = jnp.dot(x_ref[...], w_ref[...], preferred_element_type=jnp.float32)
    logits = logits + b_ref[...]

    # Online logsumexp across vocab tiles.
    m_prev = m_ref[...]
    m_new = jnp.maximum(m_prev, jnp.max(logits, axis=-1, keepdims=True))
    l_ref[...] = l_ref[...] * jnp.exp(m_prev - m_new) + jnp.sum(
        jnp.exp(logits - m_new), axis=-1, keepdims=True)
    m_ref[...] = m_new

    # Single lane-aligned dynamic store of the raw logits into the resident output
    # row block (column offset is a multiple of tv, hence of 128 lanes).
    col = pl.multiple_of(j * tv, tv)
    o_ref[:, pl.ds(col, tv)] = logits

    # Finalize: subtract the row logsumexp in place -> single HBM writeback per row.
    @pl.when(j == pl.num_programs(1) - 1)
    def _finalize():
        lse = m_ref[...] + jnp.log(l_ref[...])
        o_ref[...] = o_ref[...] - lse


def prepare_generator_params(weight, bias, *, tv=2048):
    """One-time (model-load-time) prep of nn.Linear(dec_rnn_size, vocab) params.

    weight: [vocab, d_model] (torch layout) f32, bias: [vocab] f32.
    Returns (w_t, b2d, vocab, tv_eff):
      w_t : [d_pad, v_pad] bf16 -- transposed + padded once (never per forward call)
      b2d : [1, v_pad] f32      -- padded vocab columns get a large negative bias so
                                   they never affect the logsumexp (safe: logits stay
                                   f32 end-to-end).
    Invariant: tv_eff <= round_up(vocab, 128), so every vocab tile contains at least
    one real column and the online logsumexp never sees an all-padding tile.
    """
    vocab, d_model = weight.shape
    d_pad = _round_up(d_model, 128)
    tv_eff = _round_up(min(tv, _round_up(vocab, 128)), 128)
    v_pad = _round_up(vocab, tv_eff)

    w_t = jnp.zeros((d_pad, v_pad), jnp.bfloat16)
    w_t = w_t.at[:d_model, :vocab].set(weight.T.astype(jnp.bfloat16))
    b2d = jnp.full((1, v_pad), _NEG_LARGE, jnp.float32)
    b2d = b2d.at[:, :vocab].set(bias.astype(jnp.float32)[None, :])
    return w_t, b2d, vocab, tv_eff


@functools.partial(jax.jit, static_argnames=("vocab", "tv", "tm"))
def text_generator_forward(inputs, w_t, b2d, *, vocab, tv, tm=512):
    """inputs: [N, d_model]; w_t/b2d from prepare_generator_params; tm is a max cap.

    Returns log-probabilities [N, vocab] float32  (== LogSoftmax(Linear(inputs))).
    """
    N, d_model = inputs.shape
    d_pad, v_pad = w_t.shape
    assert d_model <= d_pad and d_pad % 128 == 0
    assert vocab <= v_pad and v_pad % tv == 0

    tm_eff, vmem_limit = _derive_tm(N, d_pad, v_pad, tv, tm)
    n_pad = _round_up(N, tm_eff)

    # Cast to bf16 for the MXU; pad only when actually needed (avoids an extra
    # N x d_model HBM round-trip on aligned shapes).
    x = inputs if inputs.dtype == jnp.bfloat16 else inputs.astype(jnp.bfloat16)
    if n_pad != N or d_pad != d_model:
        x = jnp.pad(x, ((0, n_pad - N), (0, d_pad - d_model)))

    nv = v_pad // tv
    grid = (n_pad // tm_eff, nv)

    out = pl.pallas_call(
        _generator_kernel,
        out_shape=jax.ShapeDtypeStruct((n_pad, v_pad), jnp.float32),
        grid_spec=pltpu.PrefetchScalarGridSpec(
            num_scalar_prefetch=0,
            grid=grid,
            in_specs=[
                pl.BlockSpec((tm_eff, d_pad), lambda i, j: (i, 0)),  # activations
                pl.BlockSpec((d_pad, tv), lambda i, j: (0, j)),      # weight tile
                pl.BlockSpec((1, tv), lambda i, j: (0, j)),          # bias tile (f32)
            ],
            out_specs=pl.BlockSpec((tm_eff, v_pad), lambda i, j: (i, 0)),
            scratch_shapes=[
                pltpu.VMEM((tm_eff, 1), jnp.float32),  # running max
                pltpu.VMEM((tm_eff, 1), jnp.float32),  # running sum(exp)
            ],
        ),
        compiler_params=pltpu.CompilerParams(
            dimension_semantics=("parallel", "arbitrary"),
            vmem_limit_bytes=vmem_limit,
        ),
    )(x, w_t, b2d)

    # Slice only if padding actually occurred (the slice is a full HBM copy).
    if n_pad != N or v_pad != vocab:
        out = out[:N, :vocab]
    return out


if __name__ == "__main__":
    key = jax.random.PRNGKey(0)
    k_x, k_w, k_b = jax.random.split(key, 3)

    # Small shapes consistent with the module: dec_rnn_size=32, vocab=256,
    # batch=4, seq=8 -> N=32 decoder states.
    d_model, vocab = 32, 256
    batch, seq = 4, 8
    N = batch * seq

    inputs = jax.random.normal(k_x, (N, d_model), dtype=jnp.float32)
    weight = jax.random.normal(k_w, (vocab, d_model), dtype=jnp.float32) * 0.02
    bias = jax.random.normal(k_b, (vocab,), dtype=jnp.float32) * 0.01

    # One-time "model load" prep (transpose + bf16 cast + pad) -- NOT per forward call.
    # tv=128 keeps the demo at 2 vocab tiles so the online-softmax carry is exercised;
    # real workloads use the default tv=2048.
    w_t, b2d, vocab_sz, tv_eff = prepare_generator_params(weight, bias, tv=128)
    w_t, b2d = jax.block_until_ready((w_t, b2d))

    # tm=16 caps the row tile so the demo grid is (2 row tiles, 2 vocab tiles),
    # exercising the per-row re-init, the carried logsumexp, the dynamic logits
    # store and the in-place finalize; real workloads use the default cap tm=512
    # (the actual tile is derived from the chip's VMEM budget).
    out = text_generator_forward(inputs, w_t, b2d, vocab=vocab_sz, tv=tv_eff, tm=16)
    out = jax.block_until_ready(out)
    assert out.shape == (N, vocab) and out.dtype == jnp.float32

    # Tight check vs a reference with the same bf16 input quantization.
    xq = inputs.astype(jnp.bfloat16).astype(jnp.float32)
    wq = weight.astype(jnp.bfloat16).astype(jnp.float32)
    ref_q = jax.nn.log_softmax(xq @ wq.T + bias, axis=-1)
    max_err = float(jnp.max(jnp.abs(out - ref_q)))
    assert jnp.allclose(out, ref_q, atol=2e-3, rtol=2e-3), max_err

    # Loose check vs the exact f32 torch semantics (bf16 quantization noise only).
    ref_f32 = jax.nn.log_softmax(inputs @ weight.T + bias, axis=-1)
    assert jnp.allclose(out, ref_f32, atol=3e-2, rtol=3e-2)

    print("KERNEL_OK")
</pallas_src>

<mosaic_0001>
module attributes {stable_mosaic.version = 11 : i64} {
  func.func @_generator_kernel(%arg0: i32, %arg1: i32, %arg2: memref<16x128xbf16, #tpu.memory_space<vmem>>, %arg3: memref<128x128xbf16, #tpu.memory_space<vmem>>, %arg4: memref<1x128xf32, #tpu.memory_space<vmem>>, %arg5: memref<16x256xf32, #tpu.memory_space<vmem>>, %arg6: memref<16x1xf32, #tpu.memory_space<vmem>>, %arg7: memref<16x1xf32, #tpu.memory_space<vmem>>) attributes {dimension_semantics = [#tpu.dimension_semantics<parallel>, #tpu.dimension_semantics<arbitrary>], iteration_bounds = array<i64: 2, 2>, scalar_prefetch = 0 : i64, scratch_operands = 2 : i64, tpu.core_type = #tpu.core_type<tc>, window_params = [{transform_indices = @transform_0, window_bounds = array<i64: 16, 128>}, {transform_indices = @transform_1, window_bounds = array<i64: 128, 128>}, {transform_indices = @transform_2, window_bounds = array<i64: 1, 128>}, {transform_indices = @transform_3, window_bounds = array<i64: 16, 256>}]} {
    %c0_i32 = arith.constant 0 : i32
    %0 = arith.cmpi eq, %arg1, %c0_i32 : i32
    %1 = arith.extui %0 : i1 to i32
    %c0_i32_0 = arith.constant 0 : i32
    %2 = arith.cmpi ne, %1, %c0_i32_0 : i32
    scf.if %2 {
      %cst_18 = arith.constant 0xFF800000 : f32
      %32 = vector.broadcast %cst_18 : f32 to vector<16x1xf32>
      %c0_19 = arith.constant 0 : index
      %c0_20 = arith.constant 0 : index
      %33 = vector.load %arg6[%c0_19, %c0_20] : memref<16x1xf32, #tpu.memory_space<vmem>>, vector<16x1xf32>
      tpu.vector_store %arg6[%c0_19, %c0_20], %32 {strides = array<i32>} : memref<16x1xf32, #tpu.memory_space<vmem>>, vector<16x1xf32>,
      %cst_21 = arith.constant 0.000000e+00 : f32
      %34 = vector.broadcast %cst_21 : f32 to vector<16x1xf32>
      %c0_22 = arith.constant 0 : index
      %c0_23 = arith.constant 0 : index
      %35 = vector.load %arg7[%c0_22, %c0_23] : memref<16x1xf32, #tpu.memory_space<vmem>>, vector<16x1xf32>
      tpu.vector_store %arg7[%c0_22, %c0_23], %34 {strides = array<i32>} : memref<16x1xf32, #tpu.memory_space<vmem>>, vector<16x1xf32>,
    } else {
    }
    %c0 = arith.constant 0 : index
    %c0_1 = arith.constant 0 : index
    %3 = vector.load %arg2[%c0, %c0_1] : memref<16x128xbf16, #tpu.memory_space<vmem>>, vector<16x128xbf16>
    %c0_2 = arith.constant 0 : index
    %c0_3 = arith.constant 0 : index
    %4 = vector.load %arg3[%c0_2, %c0_3] : memref<128x128xbf16, #tpu.memory_space<vmem>>, vector<128x128xbf16>
    %cst = arith.constant dense<0.000000e+00> : vector<16x128xf32>
    %5 = tpu.matmul %3, %4, %cst {dimension_numbers = #tpu.dot_dimension_numbers<[1], [0], [0], [1], [0, 0, 1, 1], [], []>} : vector<16x128xbf16>, vector<128x128xbf16>, vector<16x128xf32> -> vector<16x128xf32>
    %c0_4 = arith.constant 0 : index
    %c0_5 = arith.constant 0 : index
    %6 = vector.load %arg4[%c0_4, %c0_5] : memref<1x128xf32, #tpu.memory_space<vmem>>, vector<1x128xf32>
    %7 = vector.broadcast %6 : vector<1x128xf32> to vector<16x128xf32>
    %8 = arith.addf %5, %7 : vector<16x128xf32>
    %c0_6 = arith.constant 0 : index
    %c0_7 = arith.constant 0 : index
    %9 = vector.load %arg6[%c0_6, %c0_7] : memref<16x1xf32, #tpu.memory_space<vmem>>, vector<16x1xf32>
    %cst_8 = arith.constant dense<0xFF800000> : vector<16xf32>
    %10 = vector.multi_reduction <maximumf>, %8, %cst_8 [1] : vector<16x128xf32> to vector<16xf32>
    %11 = vector.shape_cast %10 : vector<16xf32> to vector<16x1xf32>
    %12 = arith.maximumf %9, %11 : vector<16x1xf32>
    %c0_9 = arith.constant 0 : index
    %c0_10 = arith.constant 0 : index
    %13 = vector.load %arg7[%c0_9, %c0_10] : memref<16x1xf32, #tpu.memory_space<vmem>>, vector<16x1xf32>
    %14 = arith.subf %9, %12 : vector<16x1xf32>
    %15 = math.exp %14 : vector<16x1xf32>
    %16 = arith.mulf %13, %15 : vector<16x1xf32>
    %17 = vector.broadcast %12 : vector<16x1xf32> to vector<16x128xf32>
    %18 = arith.subf %8, %17 : vector<16x128xf32>
    %19 = math.exp %18 : vector<16x128xf32>
    %cst_11 = arith.constant dense<0.000000e+00> : vector<16xf32>
    %20 = vector.multi_reduction <add>, %19, %cst_11 [1] : vector<16x128xf32> to vector<16xf32>
    %21 = vector.shape_cast %20 : vector<16xf32> to vector<16x1xf32>
    %22 = arith.addf %16, %21 : vector<16x1xf32>
    %c0_12 = arith.constant 0 : index
    %c0_13 = arith.constant 0 : index
    %23 = vector.load %arg7[%c0_12, %c0_13] : memref<16x1xf32, #tpu.memory_space<vmem>>, vector<16x1xf32>
    tpu.vector_store %arg7[%c0_12, %c0_13], %22 {strides = array<i32>} : memref<16x1xf32, #tpu.memory_space<vmem>>, vector<16x1xf32>,
    %c0_14 = arith.constant 0 : index
    %c0_15 = arith.constant 0 : index
    %24 = vector.load %arg6[%c0_14, %c0_15] : memref<16x1xf32, #tpu.memory_space<vmem>>, vector<16x1xf32>
    tpu.vector_store %arg6[%c0_14, %c0_15], %12 {strides = array<i32>} : memref<16x1xf32, #tpu.memory_space<vmem>>, vector<16x1xf32>,
    %c128_i32 = arith.constant 128 : i32
    %25 = arith.muli %arg1, %c128_i32 : i32
    %26 = tpu.assume_multiple %25, 128 : i32
    %c0_16 = arith.constant 0 : index
    %27 = arith.index_cast %26 : i32 to index
    %28 = vector.load %arg5[%c0_16, %27] : memref<16x256xf32, #tpu.memory_space<vmem>>, vector<16x128xf32>
    tpu.vector_store %arg5[%c0_16, %27], %8 {strides = array<i32>} : memref<16x256xf32, #tpu.memory_space<vmem>>, vector<16x128xf32>,
    %c1_i32 = arith.constant 1 : i32
    %29 = arith.cmpi eq, %arg1, %c1_i32 : i32
    %30 = arith.extui %29 : i1 to i32
    %c0_i32_17 = arith.constant 0 : i32
    %31 = arith.cmpi ne, %30, %c0_i32_17 : i32
    scf.if %31 {
      %c0_18 = arith.constant 0 : index
      %c0_19 = arith.constant 0 : index
      %32 = vector.load %arg6[%c0_18, %c0_19] : memref<16x1xf32, #tpu.memory_space<vmem>>, vector<16x1xf32>
      %c0_20 = arith.constant 0 : index
      %c0_21 = arith.constant 0 : index
      %33 = vector.load %arg7[%c0_20, %c0_21] : memref<16x1xf32, #tpu.memory_space<vmem>>, vector<16x1xf32>
      %34 = math.log %33 : vector<16x1xf32>
      %35 = arith.addf %32, %34 : vector<16x1xf32>
      %c0_22 = arith.constant 0 : index
      %c0_23 = arith.constant 0 : index
      %36 = vector.load %arg5[%c0_22, %c0_23] : memref<16x256xf32, #tpu.memory_space<vmem>>, vector<16x256xf32>
      %37 = vector.broadcast %35 : vector<16x1xf32> to vector<16x256xf32>
      %38 = arith.subf %36, %37 : vector<16x256xf32>
      %c0_24 = arith.constant 0 : index
      %c0_25 = arith.constant 0 : index
      %39 = vector.load %arg5[%c0_24, %c0_25] : memref<16x256xf32, #tpu.memory_space<vmem>>, vector<16x256xf32>
      tpu.vector_store %arg5[%c0_24, %c0_25], %38 {strides = array<i32>} : memref<16x256xf32, #tpu.memory_space<vmem>>, vector<16x256xf32>,
    } else {
    }
    return
  }
  func.func @transform_0(%arg0: i32, %arg1: i32) -> (i32, i32) {
    %c0_i32 = arith.constant 0 : i32
    %c0_i32_0 = arith.constant 0 : i32
    return %arg0, %c0_i32 : i32, i32
  }
  func.func @transform_1(%arg0: i32, %arg1: i32) -> (i32, i32) {
    %c0_i32 = arith.constant 0 : i32
    %c0_i32_0 = arith.constant 0 : i32
    return %c0_i32, %arg1 : i32, i32
  }
  func.func @transform_2(%arg0: i32, %arg1: i32) -> (i32, i32) {
    %c0_i32 = arith.constant 0 : i32
    %c0_i32_0 = arith.constant 0 : i32
    return %c0_i32, %arg1 : i32, i32
  }
  func.func @transform_3(%arg0: i32, %arg1: i32) -> (i32, i32) {
    %c0_i32 = arith.constant 0 : i32
    %c0_i32_0 = arith.constant 0 : i32
    return %arg0, %c0_i32 : i32, i32
  }
}

</mosaic_0001>

<llo_original>
// kernel: text_generator_forward.1
$region0: #{text_generator_forward.1}
  #allocation0 [shape = 'u32[]', space=smem, size = 0x4, offset = 0x4, fixed_abs, tag = 'smem constant byte address 0x4 - core index']
  #allocation1 [shape = 'u32[144,128]{1,0:T(1,128)}', space=vmem, size = 0x12000, scoped, tag = 'internal scratch']
  #allocation2 [shape = 'f32[16,1]{1,0:T(8,128)}', space=vmem, size = 0x2000, scoped, tag = 'scratch operand']
  #allocation3 [shape = 'f32[16,1]{1,0:T(8,128)}', space=vmem, size = 0x2000, scoped, tag = 'scratch operand']
  %s0 = inlined_call_operand.vmem [shape: bf16[32,128], index: 0, kind: input, shape index: {}]
  %s1 = inlined_call_operand.hbm [shape: bf16[128,256], index: 1, kind: input, shape index: {}]
  %s2 = inlined_call_operand.vmem [shape: f32[1,256], index: 2, kind: input, shape index: {}]
  %s3 = inlined_call_operand.hbm [shape: f32[32,256], index: 3, kind: output, shape index: {}]
  %s4 = sld [smem:[#allocation0]]
  $region57: #{text_generator_forward.1} parent=0
    _
  %s6 = ssub.s32 1, %s4
  %s7 = scalar_select 0, %s6, %s4
  $region1: #{text_generator_forward.1} parent=0
    #allocation4 [shape = 'u8[65536]{0}', space=vmem, size = 0x10000, scoped, tag = 'input window, operand 1']
    #allocation5 [shape = 's32[2]{0}', space=sflag, size = 0x8, scoped, tag = 'scoped memory for text_generator_forward.1']
    #allocation6 [shape = 's32[2]{0}', space=sflag, size = 0x8, scoped, tag = 'scoped memory for text_generator_forward.1']
    #allocation7 [shape = 'u8[32768]{0}', space=vmem, size = 0x8000, scoped, tag = 'output window, operand 0']
    %8 = vsyncpa [#allocation5], 0
    %s9 = scalar_lea.sflag [#allocation5], 1
    %10 = vsyncpa %s9, 0
    %11 = vsyncpa [#allocation6], 0
    %s12 = scalar_lea.sflag [#allocation6], 1
    %13 = vsyncpa %s12, 0
    loop: start=0, step=1, limit=6
    $region2: #{text_generator_forward.1} parent=1 // loop_pre_header
      _
    $region3: #{text_generator_forward.1} parent=1 // loop_header
      %s15 = sphi 0, %s19
      %p16 = scmp.ge.s32.totalorder %s15, 6
      %s22 = sphi 0, %s34
      %s23 = sphi 0, %s30
      %s24 = sphi 0, %s22
      %s25 = sphi 0, %s23
      %s26 = sphi 0, %s24
      %s27 = sphi 0, %s25
      %s37 = sphi 0, %s39
      %s40 = sphi 0, %s37
      %s41 = sphi 0, %s40
      %s57 = sphi 0, %s41
      %s63 = sphi 0, %s65
      %s66 = sphi 0, %s63
      %s67 = sphi 0, %s66
      %s83 = sphi 0, %s67
      %s89 = sphi 0, %s91
      %s92 = sphi 0, %s89
      %s93 = sphi 0, %s92
      %s109 = sphi 0, %s93
      %s115 = sphi 0, %s117
      %s118 = sphi 0, %s115
      %s119 = sphi 0, %s118
      %s135 = sphi 0, %s119
    $region4: #{text_generator_forward.1} parent=1 // loop_header_branch
      %18 = sbr.rel (%p16) target = $region8
    $region5: #{text_generator_forward.1} parent=1 // loop_body
      %s20 = ssub.s32 %s15, 1
      %s21 = ssub.s32 %s15, 2
      %s28 = sadd.s32 1, %s23
      %p29 = scmp.ge.s32.totalorder %s28, 2
      %s30 = scalar_select %p29, 0, %s28
      %s31 = sadd.s32 1, %s22
      %s32 = scalar_select %p29, %s31, %s22
      %p33 = scmp.ge.s32.totalorder %s32, 2
      %s34 = scalar_select %p33, 0, %s32
      %s35 = ssub.s32 %s22, %s34
      %p36 = scmp.eq.s32.totalorder %s35, 0
      %s38 = sadd.s32 %s37, 1
      %s39 = scalar_select %p36, %s37, %s38
      %p42 = pneg %p36
      %p43 = scmp.eq.s32.totalorder %s15, 3
      %p44 = por %p42, %p43
      %p45 = scmp.ne.s32.totalorder %s37, %s40
      %p46 = scmp.eq.s32.totalorder %s15, 0
      %p47 = por %p45, %p46
      %p48 = scmp.ne.s32.totalorder %s37, %s40
      %p49 = scmp.eq.s32.totalorder %s20, 3
      %p50 = por %p48, %p49
      %p51 = scmp.ne.s32.totalorder %s40, %s41
      %p52 = scmp.eq.s32.totalorder %s20, 0
      %p53 = por %p51, %p52
      %p54 = scmp.ne.s32.totalorder %s40, %s41
      %p55 = scmp.eq.s32.totalorder %s21, 3
      %p56 = por %p54, %p55
      %p58 = scmp.ne.s32.totalorder %s41, %s57
      %p59 = scmp.eq.s32.totalorder %s21, 0
      %p60 = por %p58, %p59
      %s61 = ssub.s32 %s23, %s30
      %p62 = scmp.eq.s32.totalorder %s61, 0
      %s64 = sadd.s32 %s63, 1
      %s65 = scalar_select %p62, %s63, %s64
      %p68 = pneg %p62
      %p69 = scmp.eq.s32.totalorder %s15, 3
      %p70 = por %p68, %p69
      %p71 = scmp.ne.s32.totalorder %s63, %s66
      %p72 = scmp.eq.s32.totalorder %s15, 0
      %p73 = por %p71, %p72
      %p74 = scmp.ne.s32.totalorder %s63, %s66
      %p75 = scmp.eq.s32.totalorder %s20, 3
      %p76 = por %p74, %p75
      %p77 = scmp.ne.s32.totalorder %s66, %s67
      %p78 = scmp.eq.s32.totalorder %s20, 0
      %p79 = por %p77, %p78
      %p80 = scmp.ne.s32.totalorder %s66, %s67
      %p81 = scmp.eq.s32.totalorder %s21, 3
      %p82 = por %p80, %p81
      %p84 = scmp.ne.s32.totalorder %s67, %s83
      %p85 = scmp.eq.s32.totalorder %s21, 0
      %p86 = por %p84, %p85
      %s87 = ssub.s32 %s23, %s30
      %p88 = scmp.eq.s32.totalorder %s87, 0
      %s90 = sadd.s32 %s89, 1
      %s91 = scalar_select %p88, %s89, %s90
      %p94 = pneg %p88
      %p95 = scmp.eq.s32.totalorder %s15, 3
      %p96 = por %p94, %p95
      %p97 = scmp.ne.s32.totalorder %s89, %s92
      %p98 = scmp.eq.s32.totalorder %s15, 0
      %p99 = por %p97, %p98
      %p100 = scmp.ne.s32.totalorder %s89, %s92
      %p101 = scmp.eq.s32.totalorder %s20, 3
      %p102 = por %p100, %p101
      %p103 = scmp.ne.s32.totalorder %s92, %s93
      %p104 = scmp.eq.s32.totalorder %s20, 0
      %p105 = por %p103, %p104
      %p106 = scmp.ne.s32.totalorder %s92, %s93
      %p107 = scmp.eq.s32.totalorder %s21, 3
      %p108 = por %p106, %p107
      %p110 = scmp.ne.s32.totalorder %s93, %s109
      %p111 = scmp.eq.s32.totalorder %s21, 0
      %p112 = por %p110, %p111
      %s113 = ssub.s32 %s22, %s34
      %p114 = scmp.eq.s32.totalorder %s113, 0
      %s116 = sadd.s32 %s115, 1
      %s117 = scalar_select %p114, %s115, %s116
      %p120 = pneg %p114
      %p121 = scmp.eq.s32.totalorder %s15, 3
      %p122 = por %p120, %p121
      %p123 = scmp.ne.s32.totalorder %s115, %s118
      %p124 = scmp.eq.s32.totalorder %s15, 0
      %p125 = por %p123, %p124
      %p126 = scmp.ne.s32.totalorder %s115, %s118
      %p127 = scmp.eq.s32.totalorder %s20, 3
      %p128 = por %p126, %p127
      %p129 = scmp.ne.s32.totalorder %s118, %s119
      %p130 = scmp.eq.s32.totalorder %s20, 0
      %p131 = por %p129, %p130
      %p132 = scmp.ne.s32.totalorder %s118, %s119
      %p133 = scmp.eq.s32.totalorder %s21, 3
      %p134 = por %p132, %p133
      %p136 = scmp.ne.s32.totalorder %s119, %s135
      %p137 = scmp.eq.s32.totalorder %s21, 0
      %p138 = por %p136, %p137
      %p139 = scmp.le.s32.totalorder 1, %s15
      %p140 = scmp.lt.s32.totalorder %s15, 5
      %p141 = pnand %p139, %p140
      %p142 = pneg %p141
      // Predicated region
      $region9: #{text_generator_forward.1} parent=5 // pred_check
        _
      $region10: #{text_generator_forward.1} parent=5 // pred_check_branch
        %144 = sbr.rel (%p141) target = $region12
      $region11: #{text_generator_forward.1} parent=5 // pred_region
        %s145 = ssub.s32 %s15, 1
      $region12: #{text_generator_forward.1} parent=5 // pred_fallthru
        _
      %p146 = scmp.lt.s32.totalorder %s15, 4
      // Predicated region
      $region13: #{text_generator_forward.1} parent=5 // pred_check
        %p147 = pneg %p146
      $region14: #{text_generator_forward.1} parent=5 // pred_check_branch
        %149 = sbr.rel (%p147) target = $region16
      $region15: #{text_generator_forward.1} parent=5 // pred_region
        // Predicated region
        $region17: #{text_generator_forward.1} parent=15 // pred_check
          %p150 = pneg %p47
        $region18: #{text_generator_forward.1} parent=15 // pred_check_branch
          %152 = sbr.rel (%p150) target = $region20
        $region19: #{text_generator_forward.1} parent=15 // pred_region
          %s153 = smul.u32 2, %s22
          %p154 = scmp.lt.s32.totalorder %s153, 3
          %s155 = scalar_select %p154, %s153, 3
          %s156 = smul.addr %s155, 4
          %s157 = scalar_lea.vmem %s0, %s156
          %s158 = smul.u32 2, %s22
        $region20: #{text_generator_forward.1} parent=15 // pred_fallthru
          _
        // Predicated region
        $region21: #{text_generator_forward.1} parent=15 // pred_check
          %p159 = pneg %p73
        $region22: #{text_generator_forward.1} parent=15 // pred_check_branch
          %161 = sbr.rel (%p159) target = $region24
        $region23: #{text_generator_forward.1} parent=15 // pred_region
          %s162 = sand.u32 %s63, 1
          %s163 = scalar_lea.sflag [#allocation5], %s162
          %s164 = sand.u32 %s63, 1
          %s165 = smul.addr %s164, 64
          %s166 = scalar_lea.vmem [#allocation4], %s165
          %s168 = ssub.s32 1024, 1024
          %169 = vsyncadd %s163, %s168
          %s170 = smul.addr %s23, 64
          %s171 = scalar_lea.hbm %s1, %s170
          %s172 = sshll.u32 %s166, 4
          %s173 = int_to_ptr.vmem [resolvable:$true] %s172
          %178 = dma.hbm_to_vmem [thread:$0]  %s171, 1024, %s173, %s163, 128, 64, 4
        $region24: #{text_generator_forward.1} parent=15 // pred_fallthru
          _
        // Predicated region
        $region25: #{text_generator_forward.1} parent=15 // pred_check
          %p179 = pneg %p99
        $region26: #{text_generator_forward.1} parent=15 // pred_check_branch
          %181 = sbr.rel (%p179) target = $region28
        $region27: #{text_generator_forward.1} parent=15 // pred_region
          %p182 = scmp.lt.s32.totalorder %s23, 1
          %s183 = scalar_select %p182, %s23, 1
          %s184 = scalar_lea.vmem %s2, %s183
        $region28: #{text_generator_forward.1} parent=15 // pred_fallthru
          _
      $region16: #{text_generator_forward.1} parent=5 // pred_fallthru
        _
      %p185 = scmp.le.s32.totalorder 1, %s15
      %p186 = scmp.lt.s32.totalorder %s15, 5
      %p187 = pnand %p185, %p186
      %p188 = pneg %p187
      // Predicated region
      $region29: #{text_generator_forward.1} parent=5 // pred_check
        _
      $region30: #{text_generator_forward.1} parent=5 // pred_check_branch
        %190 = sbr.rel (%p187) target = $region32
      $region31: #{text_generator_forward.1} parent=5 // pred_region
        %s191 = ssub.s32 %s15, 1
        %s192 = sand.u32 %s66, 1
        %s193 = scalar_lea.sflag [#allocation5], %s192
        %s194 = sand.u32 %s66, 1
        %s195 = smul.addr %s194, 64
        %s196 = scalar_lea.vmem [#allocation4], %s195
        // Predicated region
        $region33: #{text_generator_forward.1} parent=31 // pred_check
          %p197 = pneg %p79
        $region34: #{text_generator_forward.1} parent=31 // pred_check_branch
          %199 = sbr.rel (%p197) target = $region36
        $region35: #{text_generator_forward.1} parent=31 // pred_region
          %200 = dma.done %s193, 1024
        $region36: #{text_generator_forward.1} parent=31 // pred_fallthru
          _
        %s201 = smul.u32 2, %s24
        %p202 = scmp.lt.s32.totalorder %s201, 3
        %s203 = scalar_select %p202, %s201, 3
        %s204 = smul.addr %s203, 4
        %s205 = scalar_lea.vmem %s0, %s204
        %p206 = pneg %p53
        %p207 = pneg %p50
        %s208 = sand.u32 %s66, 1
        %s209 = scalar_lea.sflag [#allocation5], %s208
        %s210 = sand.u32 %s66, 1
        %s211 = smul.addr %s210, 64
        %s212 = scalar_lea.vmem [#allocation4], %s211
        %p213 = pneg %p79
        %p214 = pneg %p76
        %p215 = scmp.lt.s32.totalorder %s25, 1
        %s216 = scalar_select %p215, %s25, 1
        %s217 = scalar_lea.vmem %s2, %s216
        %p218 = pneg %p105
        %p219 = pneg %p102
        %p220 = pneg %p131
        %p221 = pneg %p128
        %s222 = sand.u32 %s118, 1
        %s223 = scalar_lea.sflag [#allocation6], %s222
        %s224 = sand.u32 %s118, 1
        %s225 = smul.addr %s224, 32
        %s226 = scalar_lea.vmem [#allocation7], %s225
        %s227 = smul.u32 2, %s24
        %p228 = scmp.lt.s32.totalorder %s227, 3
        %s229 = scalar_select %p228, %s227, 3
        %s230 = smul.addr %s229, 4
        %s231 = scalar_lea.vmem %s0, %s230
        %s232 = smul.u32 2, %s24
        %p233 = scmp.lt.s32.totalorder %s25, 1
        %s234 = scalar_select %p233, %s25, 1
        %s235 = scalar_lea.vmem %s2, %s234
        %s236 = smul.u32 2, %s24
        %p238 = scmp.eq.s32.totalorder %s25, 0
        // Predicated region
        $region37: #{text_generator_forward.1} parent=31 // pred_check
          %p239 = pneg %p238
        $region38: #{text_generator_forward.1} parent=31 // pred_check_branch
          %241 = sbr.rel (%p239) target = $region40
        $region39: #{text_generator_forward.1} parent=31 // pred_region
          %vm242 = vcmask 7168
          %243 = vst.msk [vmem:[#allocation2] sm:$0xff] %vm242, -inf
          %244 = vst.msk [vmem:[#allocation2 + $0x8] sm:$0xff] %vm242, -inf
          %245 = vst.msk [vmem:[#allocation3] sm:$0xff] %vm242, 0.0
          %246 = vst.msk [vmem:[#allocation3 + $0x8] sm:$0xff] %vm242, 0.0
        $region40: #{text_generator_forward.1} parent=31 // pred_fallthru
          _
        %v247 = vld [vmem:[%s231] sm:$0xf]
        %v248 = vld [vmem:[%s231 + $0x4] sm:$0xf]
        %v249 = vld [vmem:[%s196] sm:$0xf]
        %v250 = vld [vmem:[%s196 + $0x4] sm:$0xf]
        %v251 = vld [vmem:[%s196 + $0x8] sm:$0xf]
        %v252 = vld [vmem:[%s196 + $0xc] sm:$0xf]
        %v253 = vld [vmem:[%s196 + $0x10] sm:$0xf]
        %v254 = vld [vmem:[%s196 + $0x14] sm:$0xf]
        %v255 = vld [vmem:[%s196 + $0x18] sm:$0xf]
        %v256 = vld [vmem:[%s196 + $0x1c] sm:$0xf]
        %v257 = vld [vmem:[%s196 + $0x20] sm:$0xf]
        %v258 = vld [vmem:[%s196 + $0x24] sm:$0xf]
        %v259 = vld [vmem:[%s196 + $0x28] sm:$0xf]
        %v260 = vld [vmem:[%s196 + $0x2c] sm:$0xf]
        %v261 = vld [vmem:[%s196 + $0x30] sm:$0xf]
        %v262 = vld [vmem:[%s196 + $0x34] sm:$0xf]
        %v263 = vld [vmem:[%s196 + $0x38] sm:$0xf]
        %v264 = vld [vmem:[%s196 + $0x3c] sm:$0xf]
        %v265 = vld [vmem:[%s235] sm:$0x1]
        %v267 = vlaneseq
        %v268 = vshrl.u32 %v267, 7
        %v269 = vsub.s32 0, %v268
        %v270 = vrot.slane %v265, %v269
        %v274 = vunpack.c.l.b16 %v247
        %v275 = vunpack.c.l.b16 %v248
        %v276 = vpack.c.b16 %v275, %v274
        %v294 = vunpack.c.l.b16 %v249
        %v295 = vunpack.c.l.b16 %v250
        %v296 = vunpack.c.l.b16 %v251
        %v297 = vunpack.c.l.b16 %v252
        %v298 = vunpack.c.l.b16 %v253
        %v299 = vunpack.c.l.b16 %v254
        %v300 = vunpack.c.l.b16 %v255
        %v301 = vunpack.c.l.b16 %v256
        %v302 = vunpack.c.l.b16 %v257
        %v303 = vunpack.c.l.b16 %v258
        %v304 = vunpack.c.l.b16 %v259
        %v305 = vunpack.c.l.b16 %v260
        %v306 = vunpack.c.l.b16 %v261
        %v307 = vunpack.c.l.b16 %v262
        %v308 = vunpack.c.l.b16 %v263
        %v309 = vunpack.c.l.b16 %v264
        %v310 = vpack.c.b16 %v295, %v294
        %v311 = vpack.c.b16 %v297, %v296
        %v312 = vpack.c.b16 %v299, %v298
        %v313 = vpack.c.b16 %v301, %v300
        %v314 = vpack.c.b16 %v303, %v302
        %v315 = vpack.c.b16 %v305, %v304
        %v316 = vpack.c.b16 %v307, %v306
        %v317 = vpack.c.b16 %v309, %v308
        %326 = vmatprep.subr.bf16.mxu0 0
        %327 = vmatpush1.bf16.msra.mxu0 %v310
        %328 = vmatprep.subr.bf16.mxu0 0
        %329 = vmatpush1.bf16.msra.mxu0 %v311
        %330 = vmatprep.subr.bf16.mxu0 0
        %331 = vmatpush1.bf16.msra.mxu0 %v312
        %332 = vmatprep.subr.bf16.mxu0 0
        %333 = vmatpush1.bf16.msra.mxu0 %v313
        %334 = vmatprep.subr.bf16.mxu0 0
        %335 = vmatpush1.bf16.msra.mxu0 %v314
        %336 = vmatprep.subr.bf16.mxu0 0
        %337 = vmatpush1.bf16.msra.mxu0 %v315
        %338 = vmatprep.subr.bf16.mxu0 0
        %339 = vmatpush1.bf16.msra.mxu0 %v316
        %340 = vmatprep.subr.bf16.mxu0 0
        %341 = vmatpush1.bf16.msra.mxu0 %v317
        %342 = vmatprep.subr.bf16.mxu0 0
        %343 = vmatpush1.bf16.msra.mxu0 0
        %344 = vmatprep.subr.bf16.mxu0 0
        %345 = vmatpush1.bf16.msra.mxu0 0
        %346 = vmatprep.subr.bf16.mxu0 0
        %347 = vmatpush1.bf16.msra.mxu0 0
        %348 = vmatprep.subr.bf16.mxu0 0
        %349 = vmatpush1.bf16.msra.mxu0 0
        %350 = vmatprep.subr.bf16.mxu0 0
        %351 = vmatpush1.bf16.msra.mxu0 0
        %352 = vmatprep.subr.bf16.mxu0 0
        %353 = vmatpush1.bf16.msra.mxu0 0
        %354 = vmatprep.subr.bf16.mxu0 0
        %355 = vmatpush1.bf16.msra.mxu0 0
        %356 = vmatprep.subr.bf16.mxu0 0
        %357 = vmatpush1.bf16.msra.mxu0 0
        %358 = vmatprep.mubr.bf16.mxu0 0
        %359 = vmatmul.mubr.bf16.gmra.mrb[0].mxu0 %v276
        %v360 = vpop.f32.mrb[0].mxu0
        %v361 = vadd.f32 %v270, %v360
        %v362 = vpop.f32.mrb[0].mxu0
        %v363 = vpop.f32.mrb[0].mxu0
        %v364 = vadd.f32 %v270, %v363
        %v365 = vpop.f32.mrb[0].mxu0
        %366 = vdwg.mxu0
        %v367 = vld [vmem:[#allocation2] sm:$0xff]
        %v368 = vld [vmem:[#allocation2 + $0x8] sm:$0xff]
        %369 = vmax.xlane.f32.xlu0 %v361
        %v370 = vpop.xlane.xlu0 %369
        %371 = vmax.xlane.f32.xlu0 %v364
        %v372 = vpop.xlane.xlu0 %371
        %v373 = vmax.f32 %v367, %v370
        %v374 = vmax.f32 %v368, %v372
        %v375 = vld [vmem:[#allocation3] sm:$0xff]
        %v376 = vld [vmem:[#allocation3 + $0x8] sm:$0xff]
        %v377 = vsub.f32 %v367, %v373
        %v378 = vsub.f32 %v368, %v374
        %v379 = vmul.f32 %v377, 1.442695
        %v380 = vpow.pop %v379
        %v381 = vmul.f32 %v378, 1.442695
        %v382 = vpow.pop %v381
        %v383 = vmul.f32 %v375, %v380
        %v384 = vmul.f32 %v376, %v382
        %386 = vset.pattern.permute.xlu0 0
        %387 = vperm.xlu0 %386, %v373
        %v388 = vpop.permute.xlu0 %387
        %391 = vset.pattern.permute.xlu0 0
        %392 = vperm.xlu0 %391, %v374
        %v393 = vpop.permute.xlu0 %392
        %v395 = vsub.f32 %v361, %v388
        %v396 = vsub.f32 %v364, %v393
        %v397 = vmul.f32 %v395, 1.442695
        %v398 = vpow.pop %v397
        %v399 = vmul.f32 %v396, 1.442695
        %v400 = vpow.pop %v399
        %401 = vadd.xlane.f32.xlu0 %v398
        %v402 = vpop.xlane.xlu0 %401
        %403 = vadd.xlane.f32.xlu0 %v400
        %v404 = vpop.xlane.xlu0 %403
        %v405 = vadd.f32 %v383, %v402
        %v406 = vadd.f32 %v384, %v404
        %vm407 = vcmask 7168
        %408 = vst.msk [vmem:[#allocation3] sm:$0xff] %vm407, %v405
        %409 = vst.msk [vmem:[#allocation3 + $0x8] sm:$0xff] %vm407, %v406
        %410 = vst.msk [vmem:[#allocation2] sm:$0xff] %vm407, %v373
        %411 = vst.msk [vmem:[#allocation2 + $0x8] sm:$0xff] %vm407, %v374
        %s412 = smul.u32 %s25, 128
        %s413 = sshra.s32 %s412, 7
        %s414 = sand.u32 %s412, 127
        %s415 = smul.addr %s413, 8
        %s416 = scalar_lea.vmem %s226, %s415 [#allocation7]
        %417 = vst [vmem:[%s416] sm:$0xff] %v361
        %418 = vst [vmem:[%s416 + $0x10] sm:$0xff] %v364
        %p419 = scmp.eq.s32.totalorder %s25, 1
        // Predicated region
        $region41: #{text_generator_forward.1} parent=31 // pred_check
          %p420 = pneg %p419
        $region42: #{text_generator_forward.1} parent=31 // pred_check_branch
          %422 = sbr.rel (%p420) target = $region44
        $region43: #{text_generator_forward.1} parent=31 // pred_region
          %v423 = vld [vmem:[#allocation2] sm:$0xff]
          %v424 = vld [vmem:[#allocation2 + $0x8] sm:$0xff]
          %v425 = vld [vmem:[#allocation3] sm:$0xff]
          %v426 = vld [vmem:[#allocation3 + $0x8] sm:$0xff]
          %v427 = vlog2.pop %v425
          %v428 = vmul.f32 %v427, 0.6931472
          %v429 = vlog2.pop %v426
          %v430 = vmul.f32 %v429, 0.6931472
          %v431 = vadd.f32 %v423, %v428
          %v432 = vadd.f32 %v424, %v430
          %v433 = vld [vmem:[%s226] sm:$0xff]
          %v434 = vld [vmem:[%s226 + $0x8] sm:$0xff]
          %v435 = vld [vmem:[%s226 + $0x10] sm:$0xff]
          %v436 = vld [vmem:[%s226 + $0x18] sm:$0xff]
          %438 = vset.pattern.permute.xlu0 0
          %439 = vperm.xlu0 %438, %v431
          %v440 = vpop.permute.xlu0 %439
          %443 = vset.pattern.permute.xlu0 0
          %444 = vperm.xlu0 %443, %v432
          %v445 = vpop.permute.xlu0 %444
          %v447 = vsub.f32 %v433, %v440
          %v448 = vsub.f32 %v434, %v440
          %v449 = vsub.f32 %v435, %v445
          %v450 = vsub.f32 %v436, %v445
          %451 = vst [vmem:[%s226] sm:$0xff] %v447
          %452 = vst [vmem:[%s226 + $0x8] sm:$0xff] %v448
          %453 = vst [vmem:[%s226 + $0x10] sm:$0xff] %v449
          %454 = vst [vmem:[%s226 + $0x18] sm:$0xff] %v450
        $region44: #{text_generator_forward.1} parent=31 // pred_fallthru
          _
        %s455 = sand.u32 %s118, 1
        %s456 = scalar_lea.sflag [#allocation6], %s455
        %s457 = sand.u32 %s118, 1
        %s458 = smul.addr %s457, 32
        %s459 = scalar_lea.vmem [#allocation7], %s458
        // Predicated region
        $region45: #{text_generator_forward.1} parent=31 // pred_check
          %p460 = pneg %p128
        $region46: #{text_generator_forward.1} parent=31 // pred_check_branch
          %462 = sbr.rel (%p460) target = $region48
        $region47: #{text_generator_forward.1} parent=31 // pred_region
          %s463 = smul.u32 2, %s24
          %s465 = ssub.s32 512, 512
          %466 = vsyncadd %s456, %s465
          %s467 = smul.addr %s463, 2
          %s468 = smul.addr %s467, 128
          %s469 = scalar_lea.hbm %s3, %s468
          %s470 = sshll.u32 %s459, 4
          %s471 = int_to_ptr.vmem [resolvable:$true] %s470
          %476 = dma.vmem_to_hbm [thread:$0]  %s471, 512, %s469, %s456, 256, 256, 16
        $region48: #{text_generator_forward.1} parent=31 // pred_fallthru
          _
      $region32: #{text_generator_forward.1} parent=5 // pred_fallthru
        _
      %p477 = scmp.le.s32.totalorder 2, %s15
      // Predicated region
      $region49: #{text_generator_forward.1} parent=5 // pred_check
        %p478 = pneg %p477
      $region50: #{text_generator_forward.1} parent=5 // pred_check_branch
        %480 = sbr.rel (%p478) target = $region52
      $region51: #{text_generator_forward.1} parent=5 // pred_region
        %s481 = ssub.s32 %s15, 2
        // Predicated region
        $region53: #{text_generator_forward.1} parent=51 // pred_check
          %p482 = pneg %p134
        $region54: #{text_generator_forward.1} parent=51 // pred_check_branch
          %484 = sbr.rel (%p482) target = $region56
        $region55: #{text_generator_forward.1} parent=51 // pred_region
          %s485 = sand.u32 %s119, 1
          %s486 = scalar_lea.sflag [#allocation6], %s485
          %s487 = sand.u32 %s119, 1
          %s488 = smul.addr %s487, 32
          %s489 = scalar_lea.vmem [#allocation7], %s488
          %490 = dma.done %s486, 512
        $region56: #{text_generator_forward.1} parent=51 // pred_fallthru
          _
      $region52: #{text_generator_forward.1} parent=5 // pred_fallthru
        _
    $region6: #{text_generator_forward.1} parent=1 // loop_footer
      %s19 = sadd.s32 1, %s15
    $region7: #{text_generator_forward.1} parent=1 // loop_footer_branch
      %14 = sbr.rel target = $region3
    $region8: #{text_generator_forward.1} parent=1 // loop_exit
      _
    %491 = vsyncpa [#allocation5], 1
    %s492 = scalar_lea.sflag [#allocation5], 1
    %493 = vsyncpa %s492, 1
    %494 = vsyncpa [#allocation6], 1
    %s495 = scalar_lea.sflag [#allocation6], 1
    %496 = vsyncpa %s495, 1

</llo_original>
